<compile_context>
chip_gen: v7x
topology: tpu7x:2x2x1
jax: 0.10.0
libtpu: 0.0.40
codegen_flags: <defaults>
</compile_context>

<pallas_src>
import functools

import jax
import jax.numpy as jnp
from jax.experimental import pallas as pl
from jax.experimental.pallas import tpu as pltpu

LANE = 128
ACC_ROWS = 8  # one f32 vreg row-group


def _min_sublane(dtype):
    """Minimum legal second-minor block multiple for a dtype's packing."""
    return {4: 8, 2: 16, 1: 32}.get(jnp.dtype(dtype).itemsize, 8)


def _int_pow(v, n):
    """v**n for a static non-negative Python int n via repeated multiply (VALU only)."""
    if n == 0:
        return jnp.ones_like(v)
    r = v
    for _ in range(n - 1):
        r = r * v
    return r


def _pow(v, g):
    g = float(g)
    if g.is_integer() and g >= 0:
        return _int_pow(v, int(g))
    return jnp.power(v, g)


def _focal_loss_kernel(x_ref, t_ref, o_ref, *, gamma, eps, binary_targets):
    """Grid = (n_outer ["parallel"], n_inner ["arbitrary" reduction]).

    o_ref is an (8, 128) f32 block indexed only by the outer axis, so it stays
    resident in VMEM across the inner reduction and acts as the accumulator.
    """
    i = pl.program_id(1)

    @pl.when(i == 0)
    def _init():
        o_ref[...] = jnp.zeros_like(o_ref)

    x = x_ref[...].astype(jnp.float32)
    t = t_ref[...].astype(jnp.float32)

    # input.clamp(eps, 1 - eps)
    x = jnp.clip(x, eps, 1.0 - eps)

    if binary_targets:
        # Hard {0,1} targets: select before the transcendental -> 1 log, 1 pow.
        p = jnp.where(t > 0.5, x, 1.0 - x)
        loss = -(_pow(1.0 - p, gamma) * jnp.log(p))
    else:
        omx = 1.0 - x
        loss = -(t * _pow(omx, gamma) * jnp.log(x)
                 + (1.0 - t) * _pow(x, gamma) * jnp.log(omx))

    # Elementwise tree-add into one (8,128) vreg row-group (pure VALU, no layout
    # change); the single cross-lane/sublane reduction happens once in jnp.
    tile_rows, lanes = loss.shape
    o_ref[...] += loss.reshape(tile_rows // ACC_ROWS, ACC_ROWS, lanes).sum(axis=0)


def focal_loss(inputs, targets, gamma=2, eps=1e-3, max_tile_rows=4096,
               binary_targets=False):
    """Mean focal loss over all elements, matching the PyTorch FocalLoss module."""
    assert inputs.shape == targets.shape
    total = int(inputs.size)
    if total == 0:
        return jnp.float32(jnp.nan)

    # Compact target dtypes are fine (cast in-kernel); bool -> uint8 for clean layout.
    if targets.dtype == jnp.bool_:
        targets = targets.astype(jnp.uint8)

    x_flat = inputs.reshape(-1)
    t_flat = targets.reshape(-1)

    sub = max(_min_sublane(x_flat.dtype), _min_sublane(t_flat.dtype))
    rows_total = total // LANE
    tile_rows = (min(int(max_tile_rows), rows_total) // sub) * sub

    loss_sum = jnp.float32(0.0)
    n_kernel = 0
    if tile_rows > 0:
        n_tiles = rows_total // tile_rows
        rows_kernel = n_tiles * tile_rows
        n_kernel = rows_kernel * LANE

        # Leading "parallel" axis so both v7x TensorCores get half the reduction;
        # neutral on single-TC v5e/v6e.
        n_outer = 2 if (n_tiles >= 2 and n_tiles % 2 == 0) else 1
        n_inner = n_tiles // n_outer

        x2d = x_flat[:n_kernel].reshape(rows_kernel, LANE)
        t2d = t_flat[:n_kernel].reshape(rows_kernel, LANE)

        kernel = functools.partial(
            _focal_loss_kernel,
            gamma=gamma,
            eps=float(eps),
            binary_targets=bool(binary_targets),
        )

        partials = pl.pallas_call(
            kernel,
            out_shape=jax.ShapeDtypeStruct((n_outer * ACC_ROWS, LANE), jnp.float32),
            grid_spec=pltpu.PrefetchScalarGridSpec(
                num_scalar_prefetch=0,
                grid=(n_outer, n_inner),
                in_specs=[
                    pl.BlockSpec((tile_rows, LANE), lambda o, i: (o * n_inner + i, 0)),
                    pl.BlockSpec((tile_rows, LANE), lambda o, i: (o * n_inner + i, 0)),
                ],
                out_specs=pl.BlockSpec((ACC_ROWS, LANE), lambda o, i: (o, 0)),
            ),
            compiler_params=pltpu.CompilerParams(
                dimension_semantics=("parallel", "arbitrary"),
            ),
        )(x2d, t2d)
        loss_sum = jnp.sum(partials)

    # Ragged tail (< one chunk): plain jnp, no full-array pad/copy.
    tail = total - n_kernel
    if tail:
        g = float(gamma)
        xt = jnp.clip(x_flat[n_kernel:].astype(jnp.float32), float(eps), 1.0 - float(eps))
        tt = t_flat[n_kernel:].astype(jnp.float32)
        tail_loss = -(tt * jnp.power(1.0 - xt, g) * jnp.log(xt)
                      + (1.0 - tt) * jnp.power(xt, g) * jnp.log(1.0 - xt))
        loss_sum = loss_sum + jnp.sum(tail_loss)

    return loss_sum / jnp.float32(total)


def focal_loss_ref(inputs, targets, gamma=2, eps=1e-3):
    x = jnp.clip(inputs.astype(jnp.float32), eps, 1.0 - eps)
    t = targets.astype(jnp.float32)
    loss = -(
        t * jnp.power(1.0 - x, float(gamma)) * jnp.log(x)
        + (1.0 - t) * jnp.power(x, float(gamma)) * jnp.log(1.0 - x)
    )
    return loss.mean()


if __name__ == "__main__":
    key = jax.random.PRNGKey(0)
    k1, k2, k3, k4 = jax.random.split(key, 4)

    # (1) Primary: NCHW probability map, f32 targets, single-tile path.
    shape = (2, 4, 16, 16)
    x = jax.random.uniform(k1, shape, dtype=jnp.float32)
    t = (jax.random.uniform(k2, shape, dtype=jnp.float32) > 0.5).astype(jnp.float32)
    out = jax.block_until_ready(focal_loss(x, t, gamma=2, eps=1e-3))
    ref = focal_loss_ref(x, t, gamma=2, eps=1e-3)
    assert jnp.allclose(out, ref, rtol=1e-5, atol=1e-5), (out, ref)

    # (2) Binary-target fast path (1 log / 1 pow per element), same result.
    out_b = jax.block_until_ready(
        focal_loss(x, t, gamma=2, eps=1e-3, binary_targets=True))
    assert jnp.allclose(out_b, ref, rtol=1e-5, atol=1e-5), (out_b, ref)

    # (3) Multi-tile path: 2-D ("parallel","arbitrary") grid with in-kernel accumulation.
    shape3 = (2, 4, 32, 32)
    x3 = jax.random.uniform(k3, shape3, dtype=jnp.float32)
    t3 = (jax.random.uniform(k4, shape3, dtype=jnp.float32) > 0.5).astype(jnp.float32)
    out3 = jax.block_until_ready(focal_loss(x3, t3, gamma=2, eps=1e-3, max_tile_rows=16))
    ref3 = focal_loss_ref(x3, t3, gamma=2, eps=1e-3)
    assert jnp.allclose(out3, ref3, rtol=1e-5, atol=1e-5), (out3, ref3)

    # (4) Ragged size: kernel handles the chunk-aligned prefix, jnp finishes the tail.
    shape4 = (2, 4, 17, 16)
    x4 = jax.random.uniform(k1, shape4, dtype=jnp.float32)
    t4 = (jax.random.uniform(k2, shape4, dtype=jnp.float32) > 0.5).astype(jnp.float32)
    out4 = jax.block_until_ready(focal_loss(x4, t4, gamma=2, eps=1e-3))
    ref4 = focal_loss_ref(x4, t4, gamma=2, eps=1e-3)
    assert jnp.allclose(out4, ref4, rtol=1e-5, atol=1e-5), (out4, ref4)

    print("KERNEL_OK")
</pallas_src>

<mosaic_0001>
module attributes {stable_mosaic.version = 11 : i64} {
  func.func @_focal_loss_kernel(%arg0: i32, %arg1: i32, %arg2: memref<16x128xf32, #tpu.memory_space<vmem>>, %arg3: memref<16x128xf32, #tpu.memory_space<vmem>>, %arg4: memref<8x128xf32, #tpu.memory_space<vmem>>) attributes {dimension_semantics = [#tpu.dimension_semantics<parallel>, #tpu.dimension_semantics<arbitrary>], iteration_bounds = array<i64: 1, 1>, scalar_prefetch = 0 : i64, scratch_operands = 0 : i64, tpu.core_type = #tpu.core_type<tc>, window_params = [{transform_indices = @transform_0, window_bounds = array<i64: 16, 128>}, {transform_indices = @transform_1, window_bounds = array<i64: 16, 128>}, {transform_indices = @transform_2, window_bounds = array<i64: 8, 128>}]} {
    %c0_i32 = arith.constant 0 : i32
    %0 = arith.cmpi eq, %arg1, %c0_i32 : i32
    %1 = arith.extui %0 : i1 to i32
    %c0_i32_0 = arith.constant 0 : i32
    %2 = arith.cmpi ne, %1, %c0_i32_0 : i32
    scf.if %2 {
      %cst_13 = arith.constant 0.000000e+00 : f32
      %29 = vector.broadcast %cst_13 : f32 to vector<8x128xf32>
      %c0_14 = arith.constant 0 : index
      %c0_15 = arith.constant 0 : index
      %30 = vector.load %arg4[%c0_14, %c0_15] : memref<8x128xf32, #tpu.memory_space<vmem>>, vector<8x128xf32>
      tpu.vector_store %arg4[%c0_14, %c0_15], %29 {strides = array<i32>} : memref<8x128xf32, #tpu.memory_space<vmem>>, vector<8x128xf32>,
    } else {
    }
    %c0 = arith.constant 0 : index
    %c0_1 = arith.constant 0 : index
    %3 = vector.load %arg2[%c0, %c0_1] : memref<16x128xf32, #tpu.memory_space<vmem>>, vector<16x128xf32>
    %c0_2 = arith.constant 0 : index
    %c0_3 = arith.constant 0 : index
    %4 = vector.load %arg3[%c0_2, %c0_3] : memref<16x128xf32, #tpu.memory_space<vmem>>, vector<16x128xf32>
    %cst = arith.constant 1.000000e-03 : f32
    %cst_4 = arith.constant 9.990000e-01 : f32
    %5 = vector.broadcast %cst : f32 to vector<16x128xf32>
    %6 = arith.maximumf %5, %3 : vector<16x128xf32>
    %7 = vector.broadcast %cst_4 : f32 to vector<16x128xf32>
    %8 = arith.minimumf %7, %6 : vector<16x128xf32>
    %cst_5 = arith.constant 1.000000e+00 : f32
    %9 = vector.broadcast %cst_5 : f32 to vector<16x128xf32>
    %10 = arith.subf %9, %8 : vector<16x128xf32>
    %11 = arith.mulf %10, %10 : vector<16x128xf32>
    %12 = arith.mulf %4, %11 : vector<16x128xf32>
    %13 = math.log %8 : vector<16x128xf32>
    %14 = arith.mulf %12, %13 : vector<16x128xf32>
    %cst_6 = arith.constant 1.000000e+00 : f32
    %15 = vector.broadcast %cst_6 : f32 to vector<16x128xf32>
    %16 = arith.subf %15, %4 : vector<16x128xf32>
    %17 = arith.mulf %8, %8 : vector<16x128xf32>
    %18 = arith.mulf %16, %17 : vector<16x128xf32>
    %19 = math.log %10 : vector<16x128xf32>
    %20 = arith.mulf %18, %19 : vector<16x128xf32>
    %21 = arith.addf %14, %20 : vector<16x128xf32>
    %cst_7 = arith.constant 0.000000e+00 : f32
    %22 = vector.broadcast %cst_7 : f32 to vector<16x128xf32>
    %23 = arith.subf %22, %21 : vector<16x128xf32>
    %c0_8 = arith.constant 0 : index
    %c0_9 = arith.constant 0 : index
    %24 = vector.load %arg4[%c0_8, %c0_9] : memref<8x128xf32, #tpu.memory_space<vmem>>, vector<8x128xf32>
    %25 = vector.shape_cast %23 : vector<16x128xf32> to vector<2x8x128xf32>
    %cst_10 = arith.constant dense<0.000000e+00> : vector<8x128xf32>
    %26 = vector.multi_reduction <add>, %25, %cst_10 [0] : vector<2x8x128xf32> to vector<8x128xf32>
    %27 = arith.addf %24, %26 : vector<8x128xf32>
    %c0_11 = arith.constant 0 : index
    %c0_12 = arith.constant 0 : index
    %28 = vector.load %arg4[%c0_11, %c0_12] : memref<8x128xf32, #tpu.memory_space<vmem>>, vector<8x128xf32>
    tpu.vector_store %arg4[%c0_11, %c0_12], %27 {strides = array<i32>} : memref<8x128xf32, #tpu.memory_space<vmem>>, vector<8x128xf32>,
    return
  }
  func.func @transform_0(%arg0: i32, %arg1: i32) -> (i32, i32) {
    %c1_i32 = arith.constant 1 : i32
    %0 = arith.muli %arg0, %c1_i32 : i32
    %1 = arith.addi %0, %arg1 : i32
    %c0_i32 = arith.constant 0 : i32
    %c0_i32_0 = arith.constant 0 : i32
    return %1, %c0_i32 : i32, i32
  }
  func.func @transform_1(%arg0: i32, %arg1: i32) -> (i32, i32) {
    %c1_i32 = arith.constant 1 : i32
    %0 = arith.muli %arg0, %c1_i32 : i32
    %1 = arith.addi %0, %arg1 : i32
    %c0_i32 = arith.constant 0 : i32
    %c0_i32_0 = arith.constant 0 : i32
    return %1, %c0_i32 : i32, i32
  }
  func.func @transform_2(%arg0: i32, %arg1: i32) -> (i32, i32) {
    %c0_i32 = arith.constant 0 : i32
    %c0_i32_0 = arith.constant 0 : i32
    return %arg0, %c0_i32 : i32, i32
  }
}

</mosaic_0001>

<llo_original>
// kernel: tpu_custom_call.1
$region0: #{tpu_custom_call.1}
  #allocation0 [shape = 'u32[]', space=smem, size = 0x4, offset = 0x4, fixed_abs, tag = 'smem constant byte address 0x4 - core index']
  #allocation1 [shape = 'u32[144,128]{1,0:T(1,128)}', space=vmem, size = 0x12000, scoped, tag = 'internal scratch']
  %s0 = inlined_call_operand.hbm [shape: f32[16,128], index: 0, kind: input, shape index: {}]
  %s1 = inlined_call_operand.hbm [shape: f32[16,128], index: 1, kind: input, shape index: {}]
  %s2 = inlined_call_operand.hbm [shape: f32[8,128], index: 2, kind: output, shape index: {}]
  %s3 = sld [smem:[#allocation0]]
  $region30: #{tpu_custom_call.1} parent=0
    _
  %s5 = ssub.s32 1, %s3
  %s6 = scalar_select 0, %s5, %s3
  $region1: #{tpu_custom_call.1} parent=0
    #allocation2 [shape = 'u8[8192]{0}', space=vmem, size = 0x2000, scoped, tag = 'input window, operand 0, single buffered']
    #allocation3 [shape = 's32[1]{0}', space=sflag, size = 0x4, scoped, tag = 'scoped memory for tpu_custom_call.1']
    #allocation4 [shape = 's32[1]{0}', space=sflag, size = 0x4, scoped, tag = 'scoped memory for tpu_custom_call.1']
    #allocation5 [shape = 'u8[8192]{0}', space=vmem, size = 0x2000, scoped, tag = 'input window, operand 1, single buffered']
    #allocation6 [shape = 's32[1]{0}', space=sflag, size = 0x4, scoped, tag = 'scoped memory for tpu_custom_call.1']
    #allocation7 [shape = 'u8[4096]{0}', space=vmem, size = 0x1000, scoped, tag = 'output window, operand 0, single buffered']
    %7 = vsyncpa [#allocation3], 0
    %8 = vsyncpa [#allocation6], 0
    %9 = vsyncpa [#allocation4], 0
    // Predicated region
    $region2: #{tpu_custom_call.1} parent=1 // pred_check
      _
    $region3: #{tpu_custom_call.1} parent=1 // pred_check_branch
      %11 = sbr.rel (0) target = $region5
    $region4: #{tpu_custom_call.1} parent=1 // pred_region
      %s12 = sadd.s32 0, 0
      %s13 = smul.u32 2, %s12
      %s15 = ssub.s32 256, 256
      %16 = vsyncadd [#allocation3], %s15
      %s17 = smul.addr %s13, 128
      %s18 = scalar_lea.hbm %s0, %s17
      %s19 = sshll.u32 [#allocation2], 4
      %s20 = int_to_ptr.vmem [resolvable:$true] %s19
      %25 = dma.hbm_to_vmem [thread:$0]  %s18, 256, %s20, [#allocation3], 128, 128, 8
    $region5: #{tpu_custom_call.1} parent=1 // pred_fallthru
      _
    // Predicated region
    $region6: #{tpu_custom_call.1} parent=1 // pred_check
      _
    $region7: #{tpu_custom_call.1} parent=1 // pred_check_branch
      %27 = sbr.rel (0) target = $region9
    $region8: #{tpu_custom_call.1} parent=1 // pred_region
      %s28 = sadd.s32 0, 0
      %s29 = smul.u32 2, %s28
      %s31 = ssub.s32 256, 256
      %32 = vsyncadd [#allocation6], %s31
      %s33 = smul.addr %s29, 128
      %s34 = scalar_lea.hbm %s1, %s33
      %s35 = sshll.u32 [#allocation5], 4
      %s36 = int_to_ptr.vmem [resolvable:$true] %s35
      %41 = dma.hbm_to_vmem [thread:$0]  %s34, 256, %s36, [#allocation6], 128, 128, 8
    $region9: #{tpu_custom_call.1} parent=1 // pred_fallthru
      _
    // Predicated region
    $region10: #{tpu_custom_call.1} parent=1 // pred_check
      _
    $region11: #{tpu_custom_call.1} parent=1 // pred_check_branch
      %43 = sbr.rel (0) target = $region13
    $region12: #{tpu_custom_call.1} parent=1 // pred_region
      %44 = dma.done [#allocation3], 256
    $region13: #{tpu_custom_call.1} parent=1 // pred_fallthru
      _
    // Predicated region
    $region14: #{tpu_custom_call.1} parent=1 // pred_check
      _
    $region15: #{tpu_custom_call.1} parent=1 // pred_check_branch
      %46 = sbr.rel (0) target = $region17
    $region16: #{tpu_custom_call.1} parent=1 // pred_region
      %47 = dma.done [#allocation6], 256
    $region17: #{tpu_custom_call.1} parent=1 // pred_fallthru
      _
    %s48 = sadd.s32 0, 0
    %s49 = smul.u32 2, %s48
    %s50 = sadd.s32 0, 0
    %s51 = smul.u32 2, %s50
    %p52 = scmp.eq.s32.totalorder 0, 0
    // Predicated region
    $region18: #{tpu_custom_call.1} parent=1 // pred_check
      %p53 = pneg %p52
    $region19: #{tpu_custom_call.1} parent=1 // pred_check_branch
      %55 = sbr.rel (%p53) target = $region21
    $region20: #{tpu_custom_call.1} parent=1 // pred_region
      %56 = vst [vmem:[#allocation7] sm:$0xff] 0.0
    $region21: #{tpu_custom_call.1} parent=1 // pred_fallthru
      _
    %v57 = vld [vmem:[#allocation2] sm:$0xff]
    %v58 = vld [vmem:[#allocation2 + $0x8] sm:$0xff]
    %v59 = vld [vmem:[#allocation5] sm:$0xff]
    %v60 = vld [vmem:[#allocation5 + $0x8] sm:$0xff]
    %v61 = vmax.f32 %v57, 0.001
    %v62 = vmax.f32 %v58, 0.001
    %v63 = vmin.f32 %v61, 0.999
    %v64 = vmin.f32 %v62, 0.999
    %v65 = vsub.f32 1.0, %v63
    %v66 = vsub.f32 1.0, %v64
    %v67 = vmul.f32 %v65, %v65
    %v68 = vmul.f32 %v66, %v66
    %v69 = vmul.f32 %v59, %v67
    %v70 = vmul.f32 %v60, %v68
    %v71 = vlog2.pop %v63
    %v72 = vmul.f32 %v71, 0.6931472
    %v73 = vlog2.pop %v64
    %v74 = vmul.f32 %v73, 0.6931472
    %v75 = vmul.f32 %v69, %v72
    %v76 = vmul.f32 %v70, %v74
    %v77 = vsub.f32 1.0, %v59
    %v78 = vsub.f32 1.0, %v60
    %v79 = vmul.f32 %v63, %v63
    %v80 = vmul.f32 %v64, %v64
    %v81 = vmul.f32 %v77, %v79
    %v82 = vmul.f32 %v78, %v80
    %v83 = vlog2.pop %v65
    %v84 = vmul.f32 %v83, 0.6931472
    %v85 = vlog2.pop %v66
    %v86 = vmul.f32 %v85, 0.6931472
    %v87 = vmul.f32 %v81, %v84
    %v88 = vmul.f32 %v82, %v86
    %v89 = vadd.f32 %v75, %v87
    %v90 = vadd.f32 %v76, %v88
    %v91 = vsub.f32 0.0, %v89
    %v92 = vsub.f32 0.0, %v90
    %v93 = vld [vmem:[#allocation7] sm:$0xff]
    %v94 = vadd.f32 %v91, %v92
    %v95 = vadd.f32 %v93, %v94
    %96 = vst [vmem:[#allocation7] sm:$0xff] %v95
    // Predicated region
    $region22: #{tpu_custom_call.1} parent=1 // pred_check
      _
    $region23: #{tpu_custom_call.1} parent=1 // pred_check_branch
      %98 = sbr.rel (0) target = $region25
    $region24: #{tpu_custom_call.1} parent=1 // pred_region
      %s100 = ssub.s32 128, 128
      %101 = vsyncadd [#allocation4], %s100
      %s103 = sshll.u32 [#allocation7], 4
      %s104 = int_to_ptr.vmem [resolvable:$true] %s103
      %106 = dma.vmem_to_hbm [thread:$0]  %s104, 128, %s2, [#allocation4]
    $region25: #{tpu_custom_call.1} parent=1 // pred_fallthru
      _
    // Predicated region
    $region26: #{tpu_custom_call.1} parent=1 // pred_check
      _
    $region27: #{tpu_custom_call.1} parent=1 // pred_check_branch
      %108 = sbr.rel (0) target = $region29
    $region28: #{tpu_custom_call.1} parent=1 // pred_region
      %109 = dma.done [#allocation4], 128
    $region29: #{tpu_custom_call.1} parent=1 // pred_fallthru
      _
    %110 = vsyncpa [#allocation3], 1
    %111 = vsyncpa [#allocation6], 1
    %112 = vsyncpa [#allocation4], 1

</llo_original>
